<compile_context>
chip_gen: v7x
topology: tpu7x:2x2x1
jax: 0.10.0
libtpu: 0.0.40
codegen_flags: <defaults>
</compile_context>

<pallas_src>
import functools

import jax
import jax.numpy as jnp
import numpy as np
from jax.experimental import pallas as pl
from jax.experimental.pallas import tpu as pltpu

_MIB = 1024 * 1024


def _round_up(x, m):
    return (x + m - 1) // m * m


def _cdiv(a, b):
    return -(-a // b)


def _vmem_budget_bytes():
    """~85% of this generation's per-core VMEM (v7x ~54 MiB, v5e/v6e ~108 MiB)."""
    cap = 64 * _MIB  # conservative default: v7x per-TensorCore capacity
    try:
        info = pltpu.get_tpu_info()
        cap = int(getattr(info, "vmem_capacity_bytes", cap)) or cap
    except Exception:
        pass
    return int(cap * 0.85)


# --------------------------------------------------------------------------- #
# Small-problem fast path: one kernel invocation, batch folded into sublanes.  #
# --------------------------------------------------------------------------- #
def _gcn_small_kernel(x_ref, w1t_ref, b1_ref, w2_ref, out_ref, *, batch, s_p):
    # conv1 for the whole batch-folded problem: one dense MXU matmul.
    xf = x_ref[...]                                               # (B*S_p, N_p)
    fc = jnp.dot(xf, w1t_ref[...], preferred_element_type=jnp.float32)
    # bias + residual + ReLU stay in f32 (v5e VPU has no bf16).
    h = jnp.maximum(fc + b1_ref[...] + xf.astype(jnp.float32), 0.0)
    h = h.astype(w2_ref.dtype)
    # conv2 per batch: Y[b] = W2 @ H[b]  (B is a small static unroll).
    for b in range(batch):
        rows = slice(b * s_p, (b + 1) * s_p)
        out_ref[rows, :] = jnp.dot(
            w2_ref[...], h[rows, :], preferred_element_type=jnp.float32
        ).astype(out_ref.dtype)


def _gcn_forward_small(x, w1, b1, w2, compute_dtype, budget, S_p, N_p):
    B, S, N = x.shape
    csize = np.dtype(compute_dtype).itemsize

    # Zero padding is exact (see note in the tiled wrapper). Fold batch into the
    # sublane axis so conv1 is a single (B*S_p, N_p) x (N_p, N_p) matmul.
    x_p = jnp.zeros((B, S_p, N_p), compute_dtype).at[:, :S, :N].set(
        x.astype(compute_dtype)).reshape(B * S_p, N_p)
    w1t_p = jnp.zeros((N_p, N_p), compute_dtype).at[:N, :N].set(
        w1.T.astype(compute_dtype))
    b1_p = jnp.zeros((1, N_p), jnp.float32).at[0, :N].set(b1.astype(jnp.float32))
    w2_p = jnp.zeros((S_p, S_p), compute_dtype).at[:S, :S].set(
        w2.astype(compute_dtype))

    cost = pl.CostEstimate(
        flops=2 * B * S_p * N_p * N_p + 2 * B * S_p * S_p * N_p,
        transcendentals=0,
        bytes_accessed=(B * S_p * N_p * (csize + 4)          # X read + out write
                        + N_p * N_p * csize + N_p * 4        # W1^T, b1
                        + S_p * S_p * csize),                 # W2
    )

    out_p = pl.pallas_call(
        functools.partial(_gcn_small_kernel, batch=B, s_p=S_p),
        out_shape=jax.ShapeDtypeStruct((B * S_p, N_p), jnp.float32),
        grid_spec=pltpu.PrefetchScalarGridSpec(
            num_scalar_prefetch=0,
            grid=(1,),
            in_specs=[
                pl.BlockSpec((B * S_p, N_p), lambda i: (0, 0)),
                pl.BlockSpec((N_p, N_p), lambda i: (0, 0)),
                pl.BlockSpec((1, N_p), lambda i: (0, 0)),
                pl.BlockSpec((S_p, S_p), lambda i: (0, 0)),
            ],
            out_specs=pl.BlockSpec((B * S_p, N_p), lambda i: (0, 0)),
        ),
        compiler_params=pltpu.CompilerParams(
            dimension_semantics=("arbitrary",),
            vmem_limit_bytes=budget,
        ),
        cost_estimate=cost,
    )(x_p, w1t_p, b1_p, w2_p)

    return out_p.reshape(B, S_p, N_p)[:, :S, :N]


# --------------------------------------------------------------------------- #
# General tiled path: grid = (B, i, k) with a persistent VMEM H cache.         #
# --------------------------------------------------------------------------- #
def _gcn_tiled_kernel(x_ref, w1t_hbm, b1_ref, w2_ref, out_ref, h_ref, w1t_vmem):
    i = pl.program_id(1)                     # output-row (state) tile index
    k = pl.program_id(2)                     # contraction (state) tile index
    ts = x_ref.shape[1]
    row = pl.multiple_of(k * ts, ts)         # aligned offset into the H cache

    # W1^T is shared by every grid step of a batch: copy it from HBM into its
    # single-buffered VMEM home once per batch (also correct under megacore
    # sharding of the batch axis, since (i==0, k==0) occurs on every core).
    @pl.when(jnp.logical_and(i == 0, k == 0))
    def _():
        pltpu.sync_copy(w1t_hbm, w1t_vmem)

    # The output block is VMEM-resident across the whole k sweep (its index_map
    # ignores k): zero it once, then accumulate in place -- no extra scratch.
    @pl.when(k == 0)
    def _():
        out_ref[...] = jnp.zeros_like(out_ref)

    # Phase A (first output-tile sweep only): build the H cache tile
    #   H_k = relu(X_k @ W1^T + b1 + X_k)     (elementwise math in f32)
    # and consume it straight from registers for this step's conv2 update.
    @pl.when(i == 0)
    def _():
        xk = x_ref[0]                                              # (ts, N_p)
        fc = jnp.dot(xk, w1t_vmem[...], preferred_element_type=jnp.float32)
        h = jnp.maximum(fc + b1_ref[...] + xk.astype(jnp.float32), 0.0)
        h = h.astype(h_ref.dtype)
        h_ref[pl.ds(row, ts), :] = h            # cache for later i-sweeps
        out_ref[0] += jnp.dot(w2_ref[...], h, preferred_element_type=jnp.float32)

    # Phase B (later sweeps): reuse the cached H tile; conv1 is not recomputed
    # and (thanks to the X index_map) the X tile is not re-fetched either.
    @pl.when(i > 0)
    def _():
        out_ref[0] += jnp.dot(w2_ref[...], h_ref[pl.ds(row, ts), :],
                              preferred_element_type=jnp.float32)


def _gcn_forward_tiled(x, w1, b1, w2, compute_dtype, budget):
    B, S, N = x.shape
    csize = np.dtype(compute_dtype).itemsize
    N_p = _round_up(N, 128)
    s16 = _round_up(S, 16)

    # Tile the state axis into as few / as large tiles as the VMEM budget allows
    # (fewer grid steps amortize the ~0.35us/step overhead; 512 only when the
    # generous v5e/v6e budget is available, 256 on v7x).
    max_ts = 512 if budget >= 96 * _MIB else 256
    h_dtype = compute_dtype

    def plan(mts):
        n_tiles = _cdiv(s16, mts)
        ts = _round_up(_cdiv(s16, n_tiles), 16)
        return ts, ts * n_tiles

    def vmem_need(ts, s_p, h_cs):
        return (2 * ts * N_p * csize          # X tile (double-buffered)
                + N_p * N_p * csize           # W1^T (single-buffered VMEM scratch)
                + 2 * N_p * 4                 # b1 row
                + 2 * ts * ts * csize         # W2 tile
                + 2 * ts * N_p * 4            # output tile (f32, accumulated in place)
                + s_p * N_p * h_cs)           # persistent H cache

    TS, S_p = plan(max_ts)
    if vmem_need(TS, S_p, np.dtype(h_dtype).itemsize) > budget:
        # v7x-style fallback: halve the dominant resident (H cache) first, then
        # shrink the tile. MXU path keeps f32 accumulation either way.
        h_dtype = jnp.bfloat16
        while vmem_need(TS, S_p, 2) > budget and max_ts > 128:
            max_ts //= 2
            TS, S_p = plan(max_ts)
        # TODO(synk): two-pass variant (Phase A spills H to HBM) for shapes whose
        # H cache cannot fit in VMEM even in bf16.

    # Zero padding is exact: padded H rows (= relu(b1)) are annihilated by zero
    # columns of padded W2; padded node columns stay zero end-to-end.
    x_p = jnp.zeros((B, S_p, N_p), compute_dtype).at[:, :S, :N].set(
        x.astype(compute_dtype))
    w1t_p = jnp.zeros((N_p, N_p), compute_dtype).at[:N, :N].set(
        w1.T.astype(compute_dtype))
    b1_p = jnp.zeros((1, N_p), jnp.float32).at[0, :N].set(b1.astype(jnp.float32))
    w2_p = jnp.zeros((S_p, S_p), compute_dtype).at[:S, :S].set(
        w2.astype(compute_dtype))

    n_i = S_p // TS
    grid = (B, n_i, n_i)

    cost = pl.CostEstimate(
        flops=2 * B * S_p * N_p * N_p + 2 * B * S_p * S_p * N_p,
        transcendentals=0,
        bytes_accessed=(B * S_p * N_p * csize        # X: ~one sweep per batch
                        + B * N_p * N_p * csize      # W1^T: once per batch
                        + N_p * 4                    # b1
                        + B * S_p * S_p * csize      # W2 tiles per batch
                        + B * S_p * N_p * 4),        # output writeback
    )

    out_p = pl.pallas_call(
        _gcn_tiled_kernel,
        out_shape=jax.ShapeDtypeStruct((B, S_p, N_p), jnp.float32),
        grid_spec=pltpu.PrefetchScalarGridSpec(
            num_scalar_prefetch=0,
            grid=grid,
            in_specs=[
                # X k-tile: fetched only on the first output-tile sweep; for
                # i > 0 the block index is constant so the DMA is skipped.
                pl.BlockSpec((1, TS, N_p),
                             lambda b, i, k: (b, jnp.where(i == 0, k, 0), 0)),
                pl.BlockSpec(memory_space=pl.ANY),                 # W1^T in HBM
                pl.BlockSpec((1, N_p), lambda b, i, k: (0, 0)),    # b1 row
                pl.BlockSpec((TS, TS), lambda b, i, k: (i, k)),    # W2 tile
            ],
            out_specs=pl.BlockSpec((1, TS, N_p), lambda b, i, k: (b, i, 0)),
            scratch_shapes=[
                pltpu.VMEM((S_p, N_p), h_dtype),          # per-batch H cache
                pltpu.VMEM((N_p, N_p), compute_dtype),    # single-buffered W1^T
            ],
        ),
        # Note: batch "parallel" only engages both v7x TensorCores when B >= 2;
        # a B == 1 workload would need a two-pass (H-to-HBM) split to use both.
        compiler_params=pltpu.CompilerParams(
            dimension_semantics=("parallel", "arbitrary", "arbitrary"),
            vmem_limit_bytes=budget,
        ),
        cost_estimate=cost,
    )(x_p, w1t_p, b1_p, w2_p)

    return out_p[:, :S, :N]


# --------------------------------------------------------------------------- #
# Public wrapper.                                                              #
# --------------------------------------------------------------------------- #
def gcn_forward(x, w1, b1, w2, *, compute_dtype=jnp.float32, force_tiled=False):
    """GCN forward pass.

    x:  [B, num_state, num_node]   float32
    w1: [num_node, num_node]       conv1.weight[:, :, 0]
    b1: [num_node]                 conv1.bias
    w2: [num_state, num_state]     conv2.weight[:, :, 0]  (conv2 has no bias)
    returns [B, num_state, num_node] float32
    """
    B, S, N = x.shape
    assert w1.shape == (N, N) and b1.shape == (N,) and w2.shape == (S, S)

    budget = _vmem_budget_bytes()
    csize = np.dtype(compute_dtype).itemsize
    N_p = _round_up(N, 128)
    s16 = _round_up(S, 16)

    # Single-invocation fast path: at the module's nominal sizes (S=32, N=16 ->
    # padded 32x128) a tiled grid is dominated by per-step overhead and DMA
    # latency, so do the whole batch-folded problem in one step.
    small_bytes = (B * s16 * N_p * (csize + 4 + 4)            # X + H + out
                   + N_p * N_p * csize + N_p * 4 + s16 * s16 * csize)
    if (not force_tiled and B <= 32 and B * s16 <= 4096
            and small_bytes <= budget // 3):
        return _gcn_forward_small(x, w1, b1, w2, compute_dtype, budget, s16, N_p)

    return _gcn_forward_tiled(x, w1, b1, w2, compute_dtype, budget)


def gcn_ref(x, w1, b1, w2):
    """Pure-JAX reference mirroring the PyTorch module."""
    hp = jax.lax.Precision.HIGHEST
    h = jnp.einsum('on,bsn->bso', w1, x, precision=hp) + b1[None, None, :]
    h = jax.nn.relu(h + x)
    return jnp.einsum('ps,bsn->bpn', w2, h, precision=hp)


if __name__ == "__main__":
    key = jax.random.PRNGKey(0)
    kx, k1, kb, k2 = jax.random.split(key, 4)

    # Nominal module sizes: batch=2, num_state=32, num_node=16.
    B, S, N = 2, 32, 16
    x = jax.random.normal(kx, (B, S, N), jnp.float32)
    w1 = 0.1 * jax.random.normal(k1, (N, N), jnp.float32)    # conv1.weight[:, :, 0]
    b1 = 0.1 * jax.random.normal(kb, (N,), jnp.float32)      # conv1.bias
    w2 = 0.1 * jax.random.normal(k2, (S, S), jnp.float32)    # conv2.weight[:, :, 0]

    ref = gcn_ref(x, w1, b1, w2)

    # 1) f32, single-step fast path (faithful to the PyTorch module).
    out = jax.block_until_ready(gcn_forward(x, w1, b1, w2))
    assert out.shape == (B, S, N)
    assert jnp.allclose(out, ref, atol=1e-3, rtol=1e-3), "f32 fast-path mismatch"

    # 2) bf16 MXU operands with f32 accumulation (v5e/v6e/v7x MXU fast path).
    out_bf16 = jax.block_until_ready(
        gcn_forward(x, w1, b1, w2, compute_dtype=jnp.bfloat16))
    assert jnp.allclose(out_bf16, ref, atol=5e-2, rtol=5e-2), "bf16 mismatch"

    # 3) Tiled path: multi-tile grid, H-cache reuse across i, k accumulation
    #    into the resident output block, skipped X DMAs for i > 0,
    #    single-buffered W1^T, and S/N padding.
    B2, S2, N2 = 2, 600, 200
    x2 = jax.random.normal(kx, (B2, S2, N2), jnp.float32)
    w1b = 0.05 * jax.random.normal(k1, (N2, N2), jnp.float32)
    b1b = 0.05 * jax.random.normal(kb, (N2,), jnp.float32)
    w2b = 0.05 * jax.random.normal(k2, (S2, S2), jnp.float32)
    out2 = jax.block_until_ready(
        gcn_forward(x2, w1b, b1b, w2b, force_tiled=True))
    ref2 = gcn_ref(x2, w1b, b1b, w2b)
    assert out2.shape == (B2, S2, N2)
    assert jnp.allclose(out2, ref2, atol=1e-3, rtol=1e-3), "tiled f32 mismatch"

    print("KERNEL_OK")
</pallas_src>

<mosaic_0001>
module attributes {stable_mosaic.version = 11 : i64} {
  func.func @_gcn_small_kernel(%arg0: i32, %arg1: memref<64x128xf32, #tpu.memory_space<vmem>>, %arg2: memref<128x128xf32, #tpu.memory_space<vmem>>, %arg3: memref<1x128xf32, #tpu.memory_space<vmem>>, %arg4: memref<32x32xf32, #tpu.memory_space<vmem>>, %arg5: memref<64x128xf32, #tpu.memory_space<vmem>>) attributes {dimension_semantics = [#tpu.dimension_semantics<arbitrary>], iteration_bounds = array<i64: 1>, scalar_prefetch = 0 : i64, scratch_operands = 0 : i64, tpu.core_type = #tpu.core_type<tc>, window_params = [{pipeline_mode = #tpu.pipeline_mode<synchronous>, transform_indices = @transform_0, window_bounds = array<i64: 64, 128>}, {pipeline_mode = #tpu.pipeline_mode<synchronous>, transform_indices = @transform_1, window_bounds = array<i64: 128, 128>}, {pipeline_mode = #tpu.pipeline_mode<synchronous>, transform_indices = @transform_2, window_bounds = array<i64: 1, 128>}, {pipeline_mode = #tpu.pipeline_mode<synchronous>, transform_indices = @transform_3, window_bounds = array<i64: 32, 32>}, {pipeline_mode = #tpu.pipeline_mode<synchronous>, transform_indices = @transform_4, window_bounds = array<i64: 64, 128>}]} {
    %c0 = arith.constant 0 : index
    %c0_0 = arith.constant 0 : index
    %0 = vector.load %arg1[%c0, %c0_0] : memref<64x128xf32, #tpu.memory_space<vmem>>, vector<64x128xf32>
    %c0_1 = arith.constant 0 : index
    %c0_2 = arith.constant 0 : index
    %1 = vector.load %arg2[%c0_1, %c0_2] : memref<128x128xf32, #tpu.memory_space<vmem>>, vector<128x128xf32>
    %cst = arith.constant dense<0.000000e+00> : vector<64x128xf32>
    %2 = tpu.matmul %0, %1, %cst {dimension_numbers = #tpu.dot_dimension_numbers<[1], [0], [0], [1], [0, 0, 1, 1], [], []>} : vector<64x128xf32>, vector<128x128xf32>, vector<64x128xf32> -> vector<64x128xf32>
    %c0_3 = arith.constant 0 : index
    %c0_4 = arith.constant 0 : index
    %3 = vector.load %arg3[%c0_3, %c0_4] : memref<1x128xf32, #tpu.memory_space<vmem>>, vector<1x128xf32>
    %4 = vector.broadcast %3 : vector<1x128xf32> to vector<64x128xf32>
    %5 = arith.addf %2, %4 : vector<64x128xf32>
    %6 = arith.addf %5, %0 : vector<64x128xf32>
    %cst_5 = arith.constant 0.000000e+00 : f32
    %7 = vector.broadcast %cst_5 : f32 to vector<64x128xf32>
    %8 = arith.maximumf %6, %7 : vector<64x128xf32>
    %c0_6 = arith.constant 0 : index
    %c0_7 = arith.constant 0 : index
    %9 = vector.load %arg4[%c0_6, %c0_7] : memref<32x32xf32, #tpu.memory_space<vmem>>, vector<32x32xf32>
    %10 = vector.extract_strided_slice %8 {offsets = [0, 0], sizes = [32, 128], strides = [1, 1]} : vector<64x128xf32> to vector<32x128xf32>
    %cst_8 = arith.constant dense<0.000000e+00> : vector<32x128xf32>
    %11 = tpu.matmul %9, %10, %cst_8 {dimension_numbers = #tpu.dot_dimension_numbers<[1], [0], [0], [1], [0, 0, 1, 1], [], []>} : vector<32x32xf32>, vector<32x128xf32>, vector<32x128xf32> -> vector<32x128xf32>
    %c0_9 = arith.constant 0 : index
    %c0_10 = arith.constant 0 : index
    %12 = vector.load %arg5[%c0_9, %c0_10] : memref<64x128xf32, #tpu.memory_space<vmem>>, vector<32x128xf32>
    tpu.vector_store %arg5[%c0_9, %c0_10], %11 {strides = array<i32>} : memref<64x128xf32, #tpu.memory_space<vmem>>, vector<32x128xf32>,
    %c0_11 = arith.constant 0 : index
    %c0_12 = arith.constant 0 : index
    %13 = vector.load %arg4[%c0_11, %c0_12] : memref<32x32xf32, #tpu.memory_space<vmem>>, vector<32x32xf32>
    %14 = vector.extract_strided_slice %8 {offsets = [32, 0], sizes = [32, 128], strides = [1, 1]} : vector<64x128xf32> to vector<32x128xf32>
    %cst_13 = arith.constant dense<0.000000e+00> : vector<32x128xf32>
    %15 = tpu.matmul %13, %14, %cst_13 {dimension_numbers = #tpu.dot_dimension_numbers<[1], [0], [0], [1], [0, 0, 1, 1], [], []>} : vector<32x32xf32>, vector<32x128xf32>, vector<32x128xf32> -> vector<32x128xf32>
    %c32 = arith.constant 32 : index
    %c0_14 = arith.constant 0 : index
    %16 = vector.load %arg5[%c32, %c0_14] : memref<64x128xf32, #tpu.memory_space<vmem>>, vector<32x128xf32>
    tpu.vector_store %arg5[%c32, %c0_14], %15 {strides = array<i32>} : memref<64x128xf32, #tpu.memory_space<vmem>>, vector<32x128xf32>,
    return
  }
  func.func @transform_0(%arg0: i32) -> (i32, i32) {
    %c0_i32 = arith.constant 0 : i32
    %c0_i32_0 = arith.constant 0 : i32
    %c0_i32_1 = arith.constant 0 : i32
    return %c0_i32, %c0_i32_0 : i32, i32
  }
  func.func @transform_1(%arg0: i32) -> (i32, i32) {
    %c0_i32 = arith.constant 0 : i32
    %c0_i32_0 = arith.constant 0 : i32
    %c0_i32_1 = arith.constant 0 : i32
    return %c0_i32, %c0_i32_0 : i32, i32
  }
  func.func @transform_2(%arg0: i32) -> (i32, i32) {
    %c0_i32 = arith.constant 0 : i32
    %c0_i32_0 = arith.constant 0 : i32
    %c0_i32_1 = arith.constant 0 : i32
    return %c0_i32, %c0_i32_0 : i32, i32
  }
  func.func @transform_3(%arg0: i32) -> (i32, i32) {
    %c0_i32 = arith.constant 0 : i32
    %c0_i32_0 = arith.constant 0 : i32
    %c0_i32_1 = arith.constant 0 : i32
    return %c0_i32, %c0_i32_0 : i32, i32
  }
  func.func @transform_4(%arg0: i32) -> (i32, i32) {
    %c0_i32 = arith.constant 0 : i32
    %c0_i32_0 = arith.constant 0 : i32
    %c0_i32_1 = arith.constant 0 : i32
    return %c0_i32, %c0_i32_0 : i32, i32
  }
}

</mosaic_0001>

<llo_original>
// kernel: tpu_custom_call.1
$region0: #{tpu_custom_call.1}
  #allocation0 [shape = 'u32[]', space=smem, size = 0x4, offset = 0x4, fixed_abs, tag = 'smem constant byte address 0x4 - core index']
  #allocation1 [shape = 'u32[144,128]{1,0:T(1,128)}', space=vmem, size = 0x12000, scoped, tag = 'internal scratch']
  %s0 = inlined_call_operand.hbm [shape: f32[64,128], index: 0, kind: input, shape index: {}]
  %s1 = inlined_call_operand.hbm [shape: f32[128,128], index: 1, kind: input, shape index: {}]
  %s2 = inlined_call_operand.vmem [shape: f32[1,128], index: 2, kind: input, shape index: {}]
  %s3 = inlined_call_operand.hbm [shape: f32[32,32], index: 3, kind: input, shape index: {}]
  %s4 = inlined_call_operand.hbm [shape: f32[64,128], index: 4, kind: output, shape index: {}]
  %s5 = sld [smem:[#allocation0]]
  $region38: #{tpu_custom_call.1} parent=0
    _
  %s7 = ssub.s32 1, %s5
  %s8 = scalar_select 0, %s7, %s5
  $region1: #{tpu_custom_call.1} parent=0
    #allocation2 [shape = 'u8[32768]{0}', space=vmem, size = 0x8000, scoped, tag = 'input window, operand 0, single buffered']
    #allocation3 [shape = 's32[1]{0}', space=sflag, size = 0x4, scoped, tag = 'scoped memory for tpu_custom_call.1']
    #allocation4 [shape = 's32[1]{0}', space=sflag, size = 0x4, scoped, tag = 'scoped memory for tpu_custom_call.1']
    #allocation5 [shape = 'u8[65536]{0}', space=vmem, size = 0x10000, scoped, tag = 'input window, operand 1, single buffered']
    #allocation6 [shape = 's32[1]{0}', space=sflag, size = 0x4, scoped, tag = 'scoped memory for tpu_custom_call.1']
    #allocation7 [shape = 'u8[16384]{0}', space=vmem, size = 0x4000, scoped, tag = 'input window, operand 3, single buffered']
    #allocation8 [shape = 'u8[32768]{0}', space=vmem, size = 0x8000, scoped, tag = 'output window, operand 0, single buffered']
    %9 = vsyncpa [#allocation3], 0
    %10 = vsyncpa [#allocation6], 0
    %11 = vsyncpa [#allocation4], 0
    // Predicated region
    $region2: #{tpu_custom_call.1} parent=1 // pred_check
      _
    $region3: #{tpu_custom_call.1} parent=1 // pred_check_branch
      %13 = sbr.rel (0) target = $region5
    $region4: #{tpu_custom_call.1} parent=1 // pred_region
      %s15 = ssub.s32 1024, 1024
      %16 = vsyncadd [#allocation3], %s15
      %s17 = sshll.u32 [#allocation2], 4
      %s18 = int_to_ptr.vmem [resolvable:$true] %s17
      %23 = dma.hbm_to_vmem [thread:$0]  %s0, 1024, %s18, [#allocation3], 128, 128, 8
    $region5: #{tpu_custom_call.1} parent=1 // pred_fallthru
      _
    // Predicated region
    $region6: #{tpu_custom_call.1} parent=1 // pred_check
      _
    $region7: #{tpu_custom_call.1} parent=1 // pred_check_branch
      %25 = sbr.rel (0) target = $region9
    $region8: #{tpu_custom_call.1} parent=1 // pred_region
      %s27 = ssub.s32 2048, 2048
      %28 = vsyncadd [#allocation6], %s27
      %s29 = sshll.u32 [#allocation5], 4
      %s30 = int_to_ptr.vmem [resolvable:$true] %s29
      %35 = dma.hbm_to_vmem [thread:$0]  %s1, 2048, %s30, [#allocation6], 128, 128, 8
    $region9: #{tpu_custom_call.1} parent=1 // pred_fallthru
      _
    // Predicated region
    $region10: #{tpu_custom_call.1} parent=1 // pred_check
      _
    $region11: #{tpu_custom_call.1} parent=1 // pred_check_branch
      %37 = sbr.rel (0) target = $region13
    $region12: #{tpu_custom_call.1} parent=1 // pred_region
      _
    $region13: #{tpu_custom_call.1} parent=1 // pred_fallthru
      _
    // Predicated region
    $region14: #{tpu_custom_call.1} parent=1 // pred_check
      _
    $region15: #{tpu_custom_call.1} parent=1 // pred_check_branch
      %39 = sbr.rel (0) target = $region17
    $region16: #{tpu_custom_call.1} parent=1 // pred_region
      %s41 = ssub.s32 512, 512
      %42 = vsyncadd [#allocation6], %s41
      %s43 = sshll.u32 [#allocation7], 4
      %s44 = int_to_ptr.vmem [resolvable:$true] %s43
      %49 = dma.hbm_to_vmem [thread:$0]  %s3, 512, %s44, [#allocation6], 128, 128, 8
    $region17: #{tpu_custom_call.1} parent=1 // pred_fallthru
      _
    // Predicated region
    $region18: #{tpu_custom_call.1} parent=1 // pred_check
      _
    $region19: #{tpu_custom_call.1} parent=1 // pred_check_branch
      %51 = sbr.rel (0) target = $region21
    $region20: #{tpu_custom_call.1} parent=1 // pred_region
      %52 = dma.done [#allocation3], 1024
    $region21: #{tpu_custom_call.1} parent=1 // pred_fallthru
      _
    // Predicated region
    $region22: #{tpu_custom_call.1} parent=1 // pred_check
      _
    $region23: #{tpu_custom_call.1} parent=1 // pred_check_branch
      %54 = sbr.rel (0) target = $region25
    $region24: #{tpu_custom_call.1} parent=1 // pred_region
      %55 = dma.done [#allocation6], 2048
    $region25: #{tpu_custom_call.1} parent=1 // pred_fallthru
      _
    // Predicated region
    $region26: #{tpu_custom_call.1} parent=1 // pred_check
      _
    $region27: #{tpu_custom_call.1} parent=1 // pred_check_branch
      %57 = sbr.rel (0) target = $region29
    $region28: #{tpu_custom_call.1} parent=1 // pred_region
      %58 = dma.done [#allocation6], 512
    $region29: #{tpu_custom_call.1} parent=1 // pred_fallthru
      _
    %v59 = vld [vmem:[#allocation2] sm:$0xff]
    %v60 = vld [vmem:[#allocation2 + $0x8] sm:$0xff]
    %v61 = vld [vmem:[#allocation2 + $0x10] sm:$0xff]
    %v62 = vld [vmem:[#allocation2 + $0x18] sm:$0xff]
    %v63 = vld [vmem:[#allocation2 + $0x20] sm:$0xff]
    %v64 = vld [vmem:[#allocation2 + $0x28] sm:$0xff]
    %v65 = vld [vmem:[#allocation2 + $0x30] sm:$0xff]
    %v66 = vld [vmem:[#allocation2 + $0x38] sm:$0xff]
    %v67 = vld [vmem:[#allocation5] sm:$0xff]
    %v68 = vld [vmem:[#allocation5 + $0x8] sm:$0xff]
    %v69 = vld [vmem:[#allocation5 + $0x10] sm:$0xff]
    %v70 = vld [vmem:[#allocation5 + $0x18] sm:$0xff]
    %v71 = vld [vmem:[#allocation5 + $0x20] sm:$0xff]
    %v72 = vld [vmem:[#allocation5 + $0x28] sm:$0xff]
    %v73 = vld [vmem:[#allocation5 + $0x30] sm:$0xff]
    %v74 = vld [vmem:[#allocation5 + $0x38] sm:$0xff]
    %v75 = vld [vmem:[#allocation5 + $0x40] sm:$0xff]
    %v76 = vld [vmem:[#allocation5 + $0x48] sm:$0xff]
    %v77 = vld [vmem:[#allocation5 + $0x50] sm:$0xff]
    %v78 = vld [vmem:[#allocation5 + $0x58] sm:$0xff]
    %v79 = vld [vmem:[#allocation5 + $0x60] sm:$0xff]
    %v80 = vld [vmem:[#allocation5 + $0x68] sm:$0xff]
    %v81 = vld [vmem:[#allocation5 + $0x70] sm:$0xff]
    %v82 = vld [vmem:[#allocation5 + $0x78] sm:$0xff]
    %v83 = vld [vmem:[%s2] sm:$0x1]
    %v85 = vlaneseq
    %v86 = vshrl.u32 %v85, 7
    %v87 = vsub.s32 0, %v86
    %v88 = vrot.slane %v83, %v87
    %90 = vmatprep.subr.mxu0 0.0
    %91 = vmatpush1.msra.mxu0 %v67
    %92 = vmatprep.subr.mxu0 0.0
    %93 = vmatpush1.msra.mxu0 %v68
    %94 = vmatprep.subr.mxu0 0.0
    %95 = vmatpush1.msra.mxu0 %v69
    %96 = vmatprep.subr.mxu0 0.0
    %97 = vmatpush1.msra.mxu0 %v70
    %98 = vmatprep.subr.mxu0 0.0
    %99 = vmatpush1.msra.mxu0 %v71
    %100 = vmatprep.subr.mxu0 0.0
    %101 = vmatpush1.msra.mxu0 %v72
    %102 = vmatprep.subr.mxu0 0.0
    %103 = vmatpush1.msra.mxu0 %v73
    %104 = vmatprep.subr.mxu0 0.0
    %105 = vmatpush1.msra.mxu0 %v74
    %106 = vmatprep.subr.mxu0 0.0
    %107 = vmatpush1.msra.mxu0 %v75
    %108 = vmatprep.subr.mxu0 0.0
    %109 = vmatpush1.msra.mxu0 %v76
    %110 = vmatprep.subr.mxu0 0.0
    %111 = vmatpush1.msra.mxu0 %v77
    %112 = vmatprep.subr.mxu0 0.0
    %113 = vmatpush1.msra.mxu0 %v78
    %114 = vmatprep.subr.mxu0 0.0
    %115 = vmatpush1.msra.mxu0 %v79
    %116 = vmatprep.subr.mxu0 0.0
    %117 = vmatpush1.msra.mxu0 %v80
    %118 = vmatprep.subr.mxu0 0.0
    %119 = vmatpush1.msra.mxu0 %v81
    %120 = vmatprep.subr.mxu0 0.0
    %121 = vmatpush1.msra.mxu0 %v82
    %122 = vmatprep.subr.mxu0 0.0
    %123 = vmatpush1.msra.mxu0 0.0
    %124 = vmatprep.subr.mxu0 0.0
    %125 = vmatpush1.msra.mxu0 0.0
    %126 = vmatprep.subr.mxu0 0.0
    %127 = vmatpush1.msra.mxu0 0.0
    %128 = vmatprep.subr.mxu0 0.0
    %129 = vmatpush1.msra.mxu0 0.0
    %130 = vmatprep.subr.mxu0 0.0
    %131 = vmatpush1.msra.mxu0 0.0
    %132 = vmatprep.subr.mxu0 0.0
    %133 = vmatpush1.msra.mxu0 0.0
    %134 = vmatprep.subr.mxu0 0.0
    %135 = vmatpush1.msra.mxu0 0.0
    %136 = vmatprep.subr.mxu0 0.0
    %137 = vmatpush1.msra.mxu0 0.0
    %138 = vmatprep.subr.mxu0 0.0
    %139 = vmatpush1.msra.mxu0 0.0
    %140 = vmatprep.subr.mxu0 0.0
    %141 = vmatpush1.msra.mxu0 0.0
    %142 = vmatprep.subr.mxu0 0.0
    %143 = vmatpush1.msra.mxu0 0.0
    %144 = vmatprep.subr.mxu0 0.0
    %145 = vmatpush1.msra.mxu0 0.0
    %146 = vmatprep.subr.mxu0 0.0
    %147 = vmatpush1.msra.mxu0 0.0
    %148 = vmatprep.subr.mxu0 0.0
    %149 = vmatpush1.msra.mxu0 0.0
    %150 = vmatprep.subr.mxu0 0.0
    %151 = vmatpush1.msra.mxu0 0.0
    %152 = vmatprep.subr.mxu0 0.0
    %153 = vmatpush1.msra.mxu0 0.0
    %154 = vmatprep.mubr.f32.mxu0 0.0
    %155 = vmatmul.mubr.f32.gmra.mrb[0].mxu0 %v59
    %v156 = vpop.f32.mrb[0].mxu0
    %v157 = vadd.f32 %v88, %v156
    %v158 = vpop.f32.mrb[0].mxu0
    %159 = vmatprep.mubr.f32.mxu0 0.0
    %160 = vmatmul.mubr.f32.gmra.mrb[0].mxu0 %v60
    %v161 = vpop.f32.mrb[0].mxu0
    %v162 = vadd.f32 %v88, %v161
    %v163 = vpop.f32.mrb[0].mxu0
    %164 = vmatprep.mubr.f32.mxu0 0.0
    %165 = vmatmul.mubr.f32.gmra.mrb[0].mxu0 %v61
    %v166 = vpop.f32.mrb[0].mxu0
    %v167 = vadd.f32 %v88, %v166
    %v168 = vpop.f32.mrb[0].mxu0
    %169 = vmatprep.mubr.f32.mxu0 0.0
    %170 = vmatmul.mubr.f32.gmra.mrb[0].mxu0 %v62
    %v171 = vpop.f32.mrb[0].mxu0
    %v172 = vadd.f32 %v88, %v171
    %v173 = vpop.f32.mrb[0].mxu0
    %174 = vmatprep.mubr.f32.mxu0 0.0
    %175 = vmatmul.mubr.f32.gmra.mrb[0].mxu0 %v63
    %v176 = vpop.f32.mrb[0].mxu0
    %v177 = vadd.f32 %v88, %v176
    %v178 = vpop.f32.mrb[0].mxu0
    %179 = vmatprep.mubr.f32.mxu0 0.0
    %180 = vmatmul.mubr.f32.gmra.mrb[0].mxu0 %v64
    %v181 = vpop.f32.mrb[0].mxu0
    %v182 = vadd.f32 %v88, %v181
    %v183 = vpop.f32.mrb[0].mxu0
    %184 = vmatprep.mubr.f32.mxu0 0.0
    %185 = vmatmul.mubr.f32.gmra.mrb[0].mxu0 %v65
    %v186 = vpop.f32.mrb[0].mxu0
    %v187 = vadd.f32 %v88, %v186
    %v188 = vpop.f32.mrb[0].mxu0
    %189 = vmatprep.mubr.f32.mxu0 0.0
    %190 = vmatmul.mubr.f32.gmra.mrb[0].mxu0 %v66
    %v191 = vpop.f32.mrb[0].mxu0
    %v192 = vadd.f32 %v88, %v191
    %v193 = vpop.f32.mrb[0].mxu0
    %194 = vdwg.mxu0
    %v195 = vadd.f32 %v157, %v59
    %v196 = vadd.f32 %v162, %v60
    %v197 = vadd.f32 %v167, %v61
    %v198 = vadd.f32 %v172, %v62
    %v199 = vadd.f32 %v177, %v63
    %v200 = vadd.f32 %v182, %v64
    %v201 = vadd.f32 %v187, %v65
    %v202 = vadd.f32 %v192, %v66
    %v203 = vmax.f32 %v195, 0.0
    %v204 = vmax.f32 %v196, 0.0
    %v205 = vmax.f32 %v197, 0.0
    %v206 = vmax.f32 %v198, 0.0
    %v207 = vmax.f32 %v199, 0.0
    %v208 = vmax.f32 %v200, 0.0
    %v209 = vmax.f32 %v201, 0.0
    %v210 = vmax.f32 %v202, 0.0
    %v211 = vld [vmem:[#allocation7] sm:$0xff]
    %v212 = vld [vmem:[#allocation7 + $0x8] sm:$0xff]
    %v213 = vld [vmem:[#allocation7 + $0x10] sm:$0xff]
    %v214 = vld [vmem:[#allocation7 + $0x18] sm:$0xff]
    %vm215 = vcmask 261120
    %v217 = vsel %vm215, %v211, 0
    %v220 = vsel %vm215, %v212, 0
    %v223 = vsel %vm215, %v213, 0
    %v226 = vsel %vm215, %v214, 0
    %228 = vmatprep.subr.mxu0 0.0
    %229 = vmatpush1.msra.mxu0 %v203
    %230 = vmatprep.subr.mxu0 0.0
    %231 = vmatpush1.msra.mxu0 %v204
    %232 = vmatprep.subr.mxu0 0.0
    %233 = vmatpush1.msra.mxu0 %v205
    %234 = vmatprep.subr.mxu0 0.0
    %235 = vmatpush1.msra.mxu0 %v206
    %236 = vmatprep.subr.mxu0 0.0
    %237 = vmatpush1.msra.mxu0 0.0
    %238 = vmatprep.subr.mxu0 0.0
    %239 = vmatpush1.msra.mxu0 0.0
    %240 = vmatprep.subr.mxu0 0.0
    %241 = vmatpush1.msra.mxu0 0.0
    %242 = vmatprep.subr.mxu0 0.0
    %243 = vmatpush1.msra.mxu0 0.0
    %244 = vmatprep.subr.mxu0 0.0
    %245 = vmatpush1.msra.mxu0 0.0
    %246 = vmatprep.subr.mxu0 0.0
    %247 = vmatpush1.msra.mxu0 0.0
    %248 = vmatprep.subr.mxu0 0.0
    %249 = vmatpush1.msra.mxu0 0.0
    %250 = vmatprep.subr.mxu0 0.0
    %251 = vmatpush1.msra.mxu0 0.0
    %252 = vmatprep.subr.mxu0 0.0
    %253 = vmatpush1.msra.mxu0 0.0
    %254 = vmatprep.subr.mxu0 0.0
    %255 = vmatpush1.msra.mxu0 0.0
    %256 = vmatprep.subr.mxu0 0.0
    %257 = vmatpush1.msra.mxu0 0.0
    %258 = vmatprep.subr.mxu0 0.0
    %259 = vmatpush1.msra.mxu0 0.0
    %260 = vmatprep.subr.mxu0 0.0
    %261 = vmatpush1.msra.mxu0 0.0
    %262 = vmatprep.subr.mxu0 0.0
    %263 = vmatpush1.msra.mxu0 0.0
    %264 = vmatprep.subr.mxu0 0.0
    %265 = vmatpush1.msra.mxu0 0.0
    %266 = vmatprep.subr.mxu0 0.0
    %267 = vmatpush1.msra.mxu0 0.0
    %268 = vmatprep.subr.mxu0 0.0
    %269 = vmatpush1.msra.mxu0 0.0
    %270 = vmatprep.subr.mxu0 0.0
    %271 = vmatpush1.msra.mxu0 0.0
    %272 = vmatprep.subr.mxu0 0.0
    %273 = vmatpush1.msra.mxu0 0.0
    %274 = vmatprep.subr.mxu0 0.0
    %275 = vmatpush1.msra.mxu0 0.0
    %276 = vmatprep.subr.mxu0 0.0
    %277 = vmatpush1.msra.mxu0 0.0
    %278 = vmatprep.subr.mxu0 0.0
    %279 = vmatpush1.msra.mxu0 0.0
    %280 = vmatprep.subr.mxu0 0.0
    %281 = vmatpush1.msra.mxu0 0.0
    %282 = vmatprep.subr.mxu0 0.0
    %283 = vmatpush1.msra.mxu0 0.0
    %284 = vmatprep.subr.mxu0 0.0
    %285 = vmatpush1.msra.mxu0 0.0
    %286 = vmatprep.subr.mxu0 0.0
    %287 = vmatpush1.msra.mxu0 0.0
    %288 = vmatprep.subr.mxu0 0.0
    %289 = vmatpush1.msra.mxu0 0.0
    %290 = vmatprep.subr.mxu0 0.0
    %291 = vmatpush1.msra.mxu0 0.0
    %292 = vmatprep.mubr.f32.mxu0 0.0
    %293 = vmatmul.mubr.f32.gmra.mrb[0].mxu0 %v217
    %v294 = vpop.f32.mrb[0].mxu0
    %v295 = vadd.f32 0.0, %v294
    %v296 = vpop.f32.mrb[0].mxu0
    %297 = vmatprep.mubr.f32.mxu0 0.0
    %298 = vmatmul.mubr.f32.gmra.mrb[0].mxu0 %v220
    %v299 = vpop.f32.mrb[0].mxu0
    %v300 = vadd.f32 0.0, %v299
    %v301 = vpop.f32.mrb[0].mxu0
    %302 = vmatprep.mubr.f32.mxu0 0.0
    %303 = vmatmul.mubr.f32.gmra.mrb[0].mxu0 %v223
    %v304 = vpop.f32.mrb[0].mxu0
    %v305 = vadd.f32 0.0, %v304
    %v306 = vpop.f32.mrb[0].mxu0
    %307 = vmatprep.mubr.f32.mxu0 0.0
    %308 = vmatmul.mubr.f32.gmra.mrb[0].mxu0 %v226
    %v309 = vpop.f32.mrb[0].mxu0
    %v310 = vadd.f32 0.0, %v309
    %v311 = vpop.f32.mrb[0].mxu0
    %312 = vdwg.mxu0
    %313 = vst [vmem:[#allocation8] sm:$0xff] %v295
    %314 = vst [vmem:[#allocation8 + $0x8] sm:$0xff] %v300
    %315 = vst [vmem:[#allocation8 + $0x10] sm:$0xff] %v305
    %316 = vst [vmem:[#allocation8 + $0x18] sm:$0xff] %v310
    %v317 = vld [vmem:[#allocation7] sm:$0xff]
    %v318 = vld [vmem:[#allocation7 + $0x8] sm:$0xff]
    %v319 = vld [vmem:[#allocation7 + $0x10] sm:$0xff]
    %v320 = vld [vmem:[#allocation7 + $0x18] sm:$0xff]
    %v322 = vsel %vm215, %v317, 0
    %v325 = vsel %vm215, %v318, 0
    %v328 = vsel %vm215, %v319, 0
    %v331 = vsel %vm215, %v320, 0
    %333 = vmatprep.subr.mxu0 0.0
    %334 = vmatpush1.msra.mxu0 %v207
    %335 = vmatprep.subr.mxu0 0.0
    %336 = vmatpush1.msra.mxu0 %v208
    %337 = vmatprep.subr.mxu0 0.0
    %338 = vmatpush1.msra.mxu0 %v209
    %339 = vmatprep.subr.mxu0 0.0
    %340 = vmatpush1.msra.mxu0 %v210
    %341 = vmatprep.subr.mxu0 0.0
    %342 = vmatpush1.msra.mxu0 0.0
    %343 = vmatprep.subr.mxu0 0.0
    %344 = vmatpush1.msra.mxu0 0.0
    %345 = vmatprep.subr.mxu0 0.0
    %346 = vmatpush1.msra.mxu0 0.0
    %347 = vmatprep.subr.mxu0 0.0
    %348 = vmatpush1.msra.mxu0 0.0
    %349 = vmatprep.subr.mxu0 0.0
    %350 = vmatpush1.msra.mxu0 0.0
    %351 = vmatprep.subr.mxu0 0.0
    %352 = vmatpush1.msra.mxu0 0.0
    %353 = vmatprep.subr.mxu0 0.0
    %354 = vmatpush1.msra.mxu0 0.0
    %355 = vmatprep.subr.mxu0 0.0
    %356 = vmatpush1.msra.mxu0 0.0
    %357 = vmatprep.subr.mxu0 0.0
    %358 = vmatpush1.msra.mxu0 0.0
    %359 = vmatprep.subr.mxu0 0.0
    %360 = vmatpush1.msra.mxu0 0.0
    %361 = vmatprep.subr.mxu0 0.0
    %362 = vmatpush1.msra.mxu0 0.0
    %363 = vmatprep.subr.mxu0 0.0
    %364 = vmatpush1.msra.mxu0 0.0
    %365 = vmatprep.subr.mxu0 0.0
    %366 = vmatpush1.msra.mxu0 0.0
    %367 = vmatprep.subr.mxu0 0.0
    %368 = vmatpush1.msra.mxu0 0.0
    %369 = vmatprep.subr.mxu0 0.0
    %370 = vmatpush1.msra.mxu0 0.0
    %371 = vmatprep.subr.mxu0 0.0
    %372 = vmatpush1.msra.mxu0 0.0
    %373 = vmatprep.subr.mxu0 0.0
    %374 = vmatpush1.msra.mxu0 0.0
    %375 = vmatprep.subr.mxu0 0.0
    %376 = vmatpush1.msra.mxu0 0.0
    %377 = vmatprep.subr.mxu0 0.0
    %378 = vmatpush1.msra.mxu0 0.0
    %379 = vmatprep.subr.mxu0 0.0
    %380 = vmatpush1.msra.mxu0 0.0
    %381 = vmatprep.subr.mxu0 0.0
    %382 = vmatpush1.msra.mxu0 0.0
    %383 = vmatprep.subr.mxu0 0.0
    %384 = vmatpush1.msra.mxu0 0.0
    %385 = vmatprep.subr.mxu0 0.0
    %386 = vmatpush1.msra.mxu0 0.0
    %387 = vmatprep.subr.mxu0 0.0
    %388 = vmatpush1.msra.mxu0 0.0
    %389 = vmatprep.subr.mxu0 0.0
    %390 = vmatpush1.msra.mxu0 0.0
    %391 = vmatprep.subr.mxu0 0.0
    %392 = vmatpush1.msra.mxu0 0.0
    %393 = vmatprep.subr.mxu0 0.0
    %394 = vmatpush1.msra.mxu0 0.0
    %395 = vmatprep.subr.mxu0 0.0
    %396 = vmatpush1.msra.mxu0 0.0
    %397 = vmatprep.mubr.f32.mxu0 0.0
    %398 = vmatmul.mubr.f32.gmra.mrb[0].mxu0 %v322
    %v399 = vpop.f32.mrb[0].mxu0
    %v400 = vadd.f32 0.0, %v399
    %v401 = vpop.f32.mrb[0].mxu0
    %402 = vmatprep.mubr.f32.mxu0 0.0
    %403 = vmatmul.mubr.f32.gmra.mrb[0].mxu0 %v325
    %v404 = vpop.f32.mrb[0].mxu0
    %v405 = vadd.f32 0.0, %v404
    %v406 = vpop.f32.mrb[0].mxu0
    %407 = vmatprep.mubr.f32.mxu0 0.0
    %408 = vmatmul.mubr.f32.gmra.mrb[0].mxu0 %v328
    %v409 = vpop.f32.mrb[0].mxu0
    %v410 = vadd.f32 0.0, %v409
    %v411 = vpop.f32.mrb[0].mxu0
    %412 = vmatprep.mubr.f32.mxu0 0.0
    %413 = vmatmul.mubr.f32.gmra.mrb[0].mxu0 %v331
    %v414 = vpop.f32.mrb[0].mxu0
    %v415 = vadd.f32 0.0, %v414
    %v416 = vpop.f32.mrb[0].mxu0
    %417 = vdwg.mxu0
    %418 = vst [vmem:[#allocation8 + $0x20] sm:$0xff] %v400
    %419 = vst [vmem:[#allocation8 + $0x28] sm:$0xff] %v405
    %420 = vst [vmem:[#allocation8 + $0x30] sm:$0xff] %v410
    %421 = vst [vmem:[#allocation8 + $0x38] sm:$0xff] %v415
    // Predicated region
    $region30: #{tpu_custom_call.1} parent=1 // pred_check
      _
    $region31: #{tpu_custom_call.1} parent=1 // pred_check_branch
      %423 = sbr.rel (0) target = $region33
    $region32: #{tpu_custom_call.1} parent=1 // pred_region
      %s425 = ssub.s32 1024, 1024
      %426 = vsyncadd [#allocation4], %s425
      %s427 = sshll.u32 [#allocation8], 4
      %s428 = int_to_ptr.vmem [resolvable:$true] %s427
      %433 = dma.vmem_to_hbm [thread:$0]  %s428, 1024, %s4, [#allocation4], 128, 128, 8
    $region33: #{tpu_custom_call.1} parent=1 // pred_fallthru
      _
    // Predicated region
    $region34: #{tpu_custom_call.1} parent=1 // pred_check
      _
    $region35: #{tpu_custom_call.1} parent=1 // pred_check_branch
      %435 = sbr.rel (0) target = $region37
    $region36: #{tpu_custom_call.1} parent=1 // pred_region
      %436 = dma.done [#allocation4], 1024
    $region37: #{tpu_custom_call.1} parent=1 // pred_fallthru
      _
    %437 = vsyncpa [#allocation3], 1
    %438 = vsyncpa [#allocation6], 1
    %439 = vsyncpa [#allocation4], 1

</llo_original>
